<compile_context>
chip_gen: v7x
topology: tpu7x:2x2x1
jax: 0.10.0
libtpu: 0.0.40
codegen_flags: <defaults>
</compile_context>

<pallas_src>
import jax
import jax.numpy as jnp
from jax import lax
from jax.experimental import pallas as pl
from jax.experimental.pallas import tpu as pltpu

EMBEDDING_SIZE = 200   # matches `embedding_size = 200` in the module
VOCAB_SIZE = 256       # small synthetic vocab (w2v.vocab_size)


def cbow_kernel(ids_ref, m_ref, b_ref, out_ref):
    # ids_ref: (B, C) int32   token ids
    # m_ref  : (V, V) float32 folded table  M = emb_table @ lin_w.T
    # b_ref  : (1, V) float32 Linear bias
    # out_ref: (B, V) float32 logits
    B, C = ids_ref.shape
    V = m_ref.shape[0]

    ids = ids_ref[...]                                        # (B, C)
    vocab = lax.broadcasted_iota(jnp.int32, (B, V), 1)        # lane iota over vocab

    # counts[b, v] = #occurrences of token v in x[b, :].  Fuses the embedding
    # gather + torch.sum(dim=1):  logits = counts @ (emb @ W.T) + b.
    # counts <= C, built directly in the MXU input dtype (f32) -> no converts.
    # NOTE: ids outside [0, V) silently contribute zero (nn.Embedding would raise).
    counts = jnp.zeros((B, V), jnp.float32)
    for c in range(C):                                        # C is small & static
        counts = counts + (ids[:, c:c + 1] == vocab).astype(jnp.float32)

    # Single (B, V) @ (V, V) MXU contraction, f32 accumulation.
    logits = jnp.dot(counts, m_ref[...], preferred_element_type=jnp.float32)
    out_ref[...] = logits + b_ref[...]                        # broadcast bias


def prepare_params(emb_table, lin_w, lin_b):
    """One-time (init / weight-update time) parameter prep, outside the forward.

    emb_table: (V, E) nn.Embedding weight
    lin_w    : (V, E) nn.Linear weight (PyTorch layout)
    lin_b    : (V,)   nn.Linear bias
    Returns the folded (V, V) matrix M = emb @ W.T and a 2-D bias.
    Exact composition: sum(emb[x]) @ W.T == counts @ (emb @ W.T).
    """
    fused = jnp.dot(emb_table, lin_w.T,
                    preferred_element_type=jnp.float32)       # (V, V)
    bias2d = lin_b.reshape(1, -1)                             # (1, V)
    return fused, bias2d


@jax.jit
def cbow_forward(x_ids, fused_table, bias2d):
    """x_ids: (B, C) int32; fused_table: (V, V) f32; bias2d: (1, V) f32 -> (B, V) f32."""
    B, _ = x_ids.shape
    V = fused_table.shape[0]

    # Everything (ids + one 256x256 f32 table + bias + out) is ~0.4 MB: no grid,
    # whole arrays resident in VMEM, no double-buffering overhead.
    return pl.pallas_call(
        cbow_kernel,
        out_shape=jax.ShapeDtypeStruct((B, V), jnp.float32),
        in_specs=[
            pl.BlockSpec(memory_space=pltpu.MemorySpace.VMEM),   # token ids
            pl.BlockSpec(memory_space=pltpu.MemorySpace.VMEM),   # fused emb @ W.T
            pl.BlockSpec(memory_space=pltpu.MemorySpace.VMEM),   # bias
        ],
        out_specs=pl.BlockSpec(memory_space=pltpu.MemorySpace.VMEM),
    )(x_ids, fused_table, bias2d)


if __name__ == "__main__":
    key = jax.random.PRNGKey(0)
    k_ids, k_emb, k_w, k_b = jax.random.split(key, 4)

    B, C = 128, 4  # full MXU tile height worth of rows, context window of 4

    # Deterministic synthetic parameters (shapes from cbow.__init__):
    #   nn.Embedding(vocab_size, embedding_size) -> (V, E)
    #   nn.Linear(embedding_size, vocab_size)    -> weight (V, E), bias (V,)
    emb_table = jax.random.normal(k_emb, (VOCAB_SIZE, EMBEDDING_SIZE), jnp.float32) * 0.02
    lin_w = jax.random.normal(k_w, (VOCAB_SIZE, EMBEDDING_SIZE), jnp.float32) * 0.02
    lin_b = jax.random.normal(k_b, (VOCAB_SIZE,), jnp.float32) * 0.02

    x_ids = jax.random.randint(k_ids, (B, C), 0, VOCAB_SIZE, jnp.int32)

    # One-time parameter prep (hoisted out of the per-call forward).
    fused_table, bias2d = prepare_params(emb_table, lin_w, lin_b)

    out = cbow_forward(x_ids, fused_table, bias2d)
    out = jax.block_until_ready(out)

    # Pure-JAX reference of the PyTorch forward (gather -> sum -> linear, f32).
    ref = jnp.take(emb_table, x_ids, axis=0).sum(axis=1) @ lin_w.T + lin_b
    assert out.shape == (B, VOCAB_SIZE)
    # Folding changes accumulation order slightly; f32 end-to-end keeps it tight.
    assert jnp.allclose(out, ref, atol=2e-3, rtol=2e-2)

    print("KERNEL_OK")
</pallas_src>

<mosaic_0001>
module attributes {stable_mosaic.version = 11 : i64} {
  func.func @cbow_kernel(%arg0: memref<128x4xi32, #tpu.memory_space<vmem>>, %arg1: memref<256x256xf32, #tpu.memory_space<vmem>>, %arg2: memref<1x256xf32, #tpu.memory_space<vmem>>, %arg3: memref<128x256xf32, #tpu.memory_space<vmem>>) attributes {dimension_semantics = [], scalar_prefetch = 0 : i64, scratch_operands = 0 : i64, tpu.core_type = #tpu.core_type<tc>} {
    %c0 = arith.constant 0 : index
    %c0_0 = arith.constant 0 : index
    %0 = vector.load %arg0[%c0, %c0_0] : memref<128x4xi32, #tpu.memory_space<vmem>>, vector<128x4xi32>
    %1 = tpu.iota {dimensions = array<i32: 1>} : vector<128x256xi32>
    %cst = arith.constant 0.000000e+00 : f32
    %2 = vector.broadcast %cst : f32 to vector<128x256xf32>
    %3 = vector.extract_strided_slice %0 {offsets = [0, 0], sizes = [128, 1], strides = [1, 1]} : vector<128x4xi32> to vector<128x1xi32>
    %4 = vector.broadcast %3 : vector<128x1xi32> to vector<128x256xi32>
    %5 = arith.cmpi eq, %4, %1 : vector<128x256xi32>
    %6 = arith.extui %5 : vector<128x256xi1> to vector<128x256xi32>
    %7 = arith.sitofp %6 : vector<128x256xi32> to vector<128x256xf32>
    %8 = arith.addf %2, %7 : vector<128x256xf32>
    %9 = vector.extract_strided_slice %0 {offsets = [0, 1], sizes = [128, 1], strides = [1, 1]} : vector<128x4xi32> to vector<128x1xi32>
    %10 = vector.broadcast %9 : vector<128x1xi32> to vector<128x256xi32>
    %11 = arith.cmpi eq, %10, %1 : vector<128x256xi32>
    %12 = arith.extui %11 : vector<128x256xi1> to vector<128x256xi32>
    %13 = arith.sitofp %12 : vector<128x256xi32> to vector<128x256xf32>
    %14 = arith.addf %8, %13 : vector<128x256xf32>
    %15 = vector.extract_strided_slice %0 {offsets = [0, 2], sizes = [128, 1], strides = [1, 1]} : vector<128x4xi32> to vector<128x1xi32>
    %16 = vector.broadcast %15 : vector<128x1xi32> to vector<128x256xi32>
    %17 = arith.cmpi eq, %16, %1 : vector<128x256xi32>
    %18 = arith.extui %17 : vector<128x256xi1> to vector<128x256xi32>
    %19 = arith.sitofp %18 : vector<128x256xi32> to vector<128x256xf32>
    %20 = arith.addf %14, %19 : vector<128x256xf32>
    %21 = vector.extract_strided_slice %0 {offsets = [0, 3], sizes = [128, 1], strides = [1, 1]} : vector<128x4xi32> to vector<128x1xi32>
    %22 = vector.broadcast %21 : vector<128x1xi32> to vector<128x256xi32>
    %23 = arith.cmpi eq, %22, %1 : vector<128x256xi32>
    %24 = arith.extui %23 : vector<128x256xi1> to vector<128x256xi32>
    %25 = arith.sitofp %24 : vector<128x256xi32> to vector<128x256xf32>
    %26 = arith.addf %20, %25 : vector<128x256xf32>
    %c0_1 = arith.constant 0 : index
    %c0_2 = arith.constant 0 : index
    %27 = vector.load %arg1[%c0_1, %c0_2] : memref<256x256xf32, #tpu.memory_space<vmem>>, vector<256x256xf32>
    %cst_3 = arith.constant dense<0.000000e+00> : vector<128x256xf32>
    %28 = tpu.matmul %26, %27, %cst_3 {dimension_numbers = #tpu.dot_dimension_numbers<[1], [0], [0], [1], [0, 0, 1, 1], [], []>} : vector<128x256xf32>, vector<256x256xf32>, vector<128x256xf32> -> vector<128x256xf32>
    %c0_4 = arith.constant 0 : index
    %c0_5 = arith.constant 0 : index
    %29 = vector.load %arg2[%c0_4, %c0_5] : memref<1x256xf32, #tpu.memory_space<vmem>>, vector<1x256xf32>
    %30 = vector.broadcast %29 : vector<1x256xf32> to vector<128x256xf32>
    %31 = arith.addf %28, %30 : vector<128x256xf32>
    %c0_6 = arith.constant 0 : index
    %c0_7 = arith.constant 0 : index
    %32 = vector.load %arg3[%c0_6, %c0_7] : memref<128x256xf32, #tpu.memory_space<vmem>>, vector<128x256xf32>
    tpu.vector_store %arg3[%c0_6, %c0_7], %31 {strides = array<i32>} : memref<128x256xf32, #tpu.memory_space<vmem>>, vector<128x256xf32>,
    return
  }
}

</mosaic_0001>

<llo_original>
// kernel: cbow_forward.1
$region0: #{cbow_forward.1}
  #allocation0 [shape = 'u32[]', space=smem, size = 0x4, offset = 0x4, fixed_abs, tag = 'smem constant byte address 0x4 - core index']
  #allocation1 [shape = 'u32[144,128]{1,0:T(1,128)}', space=vmem, size = 0x12000, scoped, tag = 'internal scratch']
  %s0 = inlined_call_operand.vmem [shape: s32[128,4], index: 0, kind: input, shape index: {}]
  %s1 = inlined_call_operand.hbm [shape: f32[256,256], index: 1, kind: input, shape index: {}]
  %s2 = inlined_call_operand.vmem [shape: f32[1,256], index: 2, kind: input, shape index: {}]
  %s3 = inlined_call_operand.hbm [shape: f32[128,256], index: 3, kind: output, shape index: {}]
  %s4 = sld [smem:[#allocation0]]
  $region26: #{cbow_forward.1} parent=0
    _
  %s6 = ssub.s32 1, %s4
  %s7 = scalar_select 0, %s6, %s4
  $region1: #{cbow_forward.1} parent=0
    #allocation2 [shape = 'u8[262144]{0}', space=vmem, size = 0x40000, scoped, tag = 'input window, operand 1, single buffered']
    #allocation3 [shape = 's32[1]{0}', space=sflag, size = 0x4, scoped, tag = 'scoped memory for cbow_forward.1']
    #allocation4 [shape = 's32[1]{0}', space=sflag, size = 0x4, scoped, tag = 'scoped memory for cbow_forward.1']
    #allocation5 [shape = 'u8[131072]{0}', space=vmem, size = 0x20000, scoped, tag = 'output window, operand 0, single buffered']
    %8 = vsyncpa [#allocation3], 0
    %9 = vsyncpa [#allocation4], 0
    // Predicated region
    $region2: #{cbow_forward.1} parent=1 // pred_check
      _
    $region3: #{cbow_forward.1} parent=1 // pred_check_branch
      %11 = sbr.rel (0) target = $region5
    $region4: #{cbow_forward.1} parent=1 // pred_region
      _
    $region5: #{cbow_forward.1} parent=1 // pred_fallthru
      _
    // Predicated region
    $region6: #{cbow_forward.1} parent=1 // pred_check
      _
    $region7: #{cbow_forward.1} parent=1 // pred_check_branch
      %13 = sbr.rel (0) target = $region9
    $region8: #{cbow_forward.1} parent=1 // pred_region
      %s15 = ssub.s32 8192, 8192
      %16 = vsyncadd [#allocation3], %s15
      %s17 = sshll.u32 [#allocation2], 4
      %s18 = int_to_ptr.vmem [resolvable:$true] %s17
      %23 = dma.hbm_to_vmem [thread:$0]  %s1, 8192, %s18, [#allocation3], 256, 256, 16
    $region9: #{cbow_forward.1} parent=1 // pred_fallthru
      _
    // Predicated region
    $region10: #{cbow_forward.1} parent=1 // pred_check
      _
    $region11: #{cbow_forward.1} parent=1 // pred_check_branch
      %25 = sbr.rel (0) target = $region13
    $region12: #{cbow_forward.1} parent=1 // pred_region
      _
    $region13: #{cbow_forward.1} parent=1 // pred_fallthru
      _
    // Predicated region
    $region14: #{cbow_forward.1} parent=1 // pred_check
      _
    $region15: #{cbow_forward.1} parent=1 // pred_check_branch
      %27 = sbr.rel (0) target = $region17
    $region16: #{cbow_forward.1} parent=1 // pred_region
      %28 = dma.done [#allocation3], 8192
    $region17: #{cbow_forward.1} parent=1 // pred_fallthru
      _
    %v29 = vld [vmem:[%s0] sm:$0xff]
    %v30 = vld [vmem:[%s0 + $0x8] sm:$0xff]
    %v31 = vld [vmem:[%s0 + $0x10] sm:$0xff]
    %v32 = vld [vmem:[%s0 + $0x18] sm:$0xff]
    %v33 = vld [vmem:[%s0 + $0x20] sm:$0xff]
    %v34 = vld [vmem:[%s0 + $0x28] sm:$0xff]
    %v35 = vld [vmem:[%s0 + $0x30] sm:$0xff]
    %v36 = vld [vmem:[%s0 + $0x38] sm:$0xff]
    %v37 = vld [vmem:[%s0 + $0x40] sm:$0xff]
    %v38 = vld [vmem:[%s0 + $0x48] sm:$0xff]
    %v39 = vld [vmem:[%s0 + $0x50] sm:$0xff]
    %v40 = vld [vmem:[%s0 + $0x58] sm:$0xff]
    %v41 = vld [vmem:[%s0 + $0x60] sm:$0xff]
    %v42 = vld [vmem:[%s0 + $0x68] sm:$0xff]
    %v43 = vld [vmem:[%s0 + $0x70] sm:$0xff]
    %v44 = vld [vmem:[%s0 + $0x78] sm:$0xff]
    %v45 = vlaneseq
    %v46 = vand.u32 %v45, 127
    %v47 = vadd.s32 %v46, 128
    %48 = vset.pattern.permute.xlu0 0
    %49 = vperm.xlu0 %48, %v29
    %v50 = vpop.permute.xlu0 %49
    %51 = vset.pattern.permute.xlu0 0
    %52 = vperm.xlu0 %51, %v30
    %v53 = vpop.permute.xlu0 %52
    %54 = vset.pattern.permute.xlu0 0
    %55 = vperm.xlu0 %54, %v31
    %v56 = vpop.permute.xlu0 %55
    %57 = vset.pattern.permute.xlu0 0
    %58 = vperm.xlu0 %57, %v32
    %v59 = vpop.permute.xlu0 %58
    %60 = vset.pattern.permute.xlu0 0
    %61 = vperm.xlu0 %60, %v33
    %v62 = vpop.permute.xlu0 %61
    %63 = vset.pattern.permute.xlu0 0
    %64 = vperm.xlu0 %63, %v34
    %v65 = vpop.permute.xlu0 %64
    %66 = vset.pattern.permute.xlu0 0
    %67 = vperm.xlu0 %66, %v35
    %v68 = vpop.permute.xlu0 %67
    %69 = vset.pattern.permute.xlu0 0
    %70 = vperm.xlu0 %69, %v36
    %v71 = vpop.permute.xlu0 %70
    %72 = vset.pattern.permute.xlu0 0
    %73 = vperm.xlu0 %72, %v37
    %v74 = vpop.permute.xlu0 %73
    %75 = vset.pattern.permute.xlu0 0
    %76 = vperm.xlu0 %75, %v38
    %v77 = vpop.permute.xlu0 %76
    %78 = vset.pattern.permute.xlu0 0
    %79 = vperm.xlu0 %78, %v39
    %v80 = vpop.permute.xlu0 %79
    %81 = vset.pattern.permute.xlu0 0
    %82 = vperm.xlu0 %81, %v40
    %v83 = vpop.permute.xlu0 %82
    %84 = vset.pattern.permute.xlu0 0
    %85 = vperm.xlu0 %84, %v41
    %v86 = vpop.permute.xlu0 %85
    %87 = vset.pattern.permute.xlu0 0
    %88 = vperm.xlu0 %87, %v42
    %v89 = vpop.permute.xlu0 %88
    %90 = vset.pattern.permute.xlu0 0
    %91 = vperm.xlu0 %90, %v43
    %v92 = vpop.permute.xlu0 %91
    %93 = vset.pattern.permute.xlu0 0
    %94 = vperm.xlu0 %93, %v44
    %v95 = vpop.permute.xlu0 %94
    %vm96 = vcmp.eq.s32.totalorder %v50, %v46
    %vm97 = vcmp.eq.s32.totalorder %v50, %v47
    %vm98 = vcmp.eq.s32.totalorder %v53, %v46
    %vm99 = vcmp.eq.s32.totalorder %v53, %v47
    %vm100 = vcmp.eq.s32.totalorder %v56, %v46
    %vm101 = vcmp.eq.s32.totalorder %v56, %v47
    %vm102 = vcmp.eq.s32.totalorder %v59, %v46
    %vm103 = vcmp.eq.s32.totalorder %v59, %v47
    %vm104 = vcmp.eq.s32.totalorder %v62, %v46
    %vm105 = vcmp.eq.s32.totalorder %v62, %v47
    %vm106 = vcmp.eq.s32.totalorder %v65, %v46
    %vm107 = vcmp.eq.s32.totalorder %v65, %v47
    %vm108 = vcmp.eq.s32.totalorder %v68, %v46
    %vm109 = vcmp.eq.s32.totalorder %v68, %v47
    %vm110 = vcmp.eq.s32.totalorder %v71, %v46
    %vm111 = vcmp.eq.s32.totalorder %v71, %v47
    %vm112 = vcmp.eq.s32.totalorder %v74, %v46
    %vm113 = vcmp.eq.s32.totalorder %v74, %v47
    %vm114 = vcmp.eq.s32.totalorder %v77, %v46
    %vm115 = vcmp.eq.s32.totalorder %v77, %v47
    %vm116 = vcmp.eq.s32.totalorder %v80, %v46
    %vm117 = vcmp.eq.s32.totalorder %v80, %v47
    %vm118 = vcmp.eq.s32.totalorder %v83, %v46
    %vm119 = vcmp.eq.s32.totalorder %v83, %v47
    %vm120 = vcmp.eq.s32.totalorder %v86, %v46
    %vm121 = vcmp.eq.s32.totalorder %v86, %v47
    %vm122 = vcmp.eq.s32.totalorder %v89, %v46
    %vm123 = vcmp.eq.s32.totalorder %v89, %v47
    %vm124 = vcmp.eq.s32.totalorder %v92, %v46
    %vm125 = vcmp.eq.s32.totalorder %v92, %v47
    %vm126 = vcmp.eq.s32.totalorder %v95, %v46
    %vm127 = vcmp.eq.s32.totalorder %v95, %v47
    %v128 = vsel %vm96, 1, 0
    %v129 = vsel %vm97, 1, 0
    %v130 = vsel %vm98, 1, 0
    %v131 = vsel %vm99, 1, 0
    %v132 = vsel %vm100, 1, 0
    %v133 = vsel %vm101, 1, 0
    %v134 = vsel %vm102, 1, 0
    %v135 = vsel %vm103, 1, 0
    %v136 = vsel %vm104, 1, 0
    %v137 = vsel %vm105, 1, 0
    %v138 = vsel %vm106, 1, 0
    %v139 = vsel %vm107, 1, 0
    %v140 = vsel %vm108, 1, 0
    %v141 = vsel %vm109, 1, 0
    %v142 = vsel %vm110, 1, 0
    %v143 = vsel %vm111, 1, 0
    %v144 = vsel %vm112, 1, 0
    %v145 = vsel %vm113, 1, 0
    %v146 = vsel %vm114, 1, 0
    %v147 = vsel %vm115, 1, 0
    %v148 = vsel %vm116, 1, 0
    %v149 = vsel %vm117, 1, 0
    %v150 = vsel %vm118, 1, 0
    %v151 = vsel %vm119, 1, 0
    %v152 = vsel %vm120, 1, 0
    %v153 = vsel %vm121, 1, 0
    %v154 = vsel %vm122, 1, 0
    %v155 = vsel %vm123, 1, 0
    %v156 = vsel %vm124, 1, 0
    %v157 = vsel %vm125, 1, 0
    %v158 = vsel %vm126, 1, 0
    %v159 = vsel %vm127, 1, 0
    %v160 = vcvt.s32.f32 %v128
    %v161 = vcvt.s32.f32 %v129
    %v162 = vcvt.s32.f32 %v130
    %v163 = vcvt.s32.f32 %v131
    %v164 = vcvt.s32.f32 %v132
    %v165 = vcvt.s32.f32 %v133
    %v166 = vcvt.s32.f32 %v134
    %v167 = vcvt.s32.f32 %v135
    %v168 = vcvt.s32.f32 %v136
    %v169 = vcvt.s32.f32 %v137
    %v170 = vcvt.s32.f32 %v138
    %v171 = vcvt.s32.f32 %v139
    %v172 = vcvt.s32.f32 %v140
    %v173 = vcvt.s32.f32 %v141
    %v174 = vcvt.s32.f32 %v142
    %v175 = vcvt.s32.f32 %v143
    %v176 = vcvt.s32.f32 %v144
    %v177 = vcvt.s32.f32 %v145
    %v178 = vcvt.s32.f32 %v146
    %v179 = vcvt.s32.f32 %v147
    %v180 = vcvt.s32.f32 %v148
    %v181 = vcvt.s32.f32 %v149
    %v182 = vcvt.s32.f32 %v150
    %v183 = vcvt.s32.f32 %v151
    %v184 = vcvt.s32.f32 %v152
    %v185 = vcvt.s32.f32 %v153
    %v186 = vcvt.s32.f32 %v154
    %v187 = vcvt.s32.f32 %v155
    %v188 = vcvt.s32.f32 %v156
    %v189 = vcvt.s32.f32 %v157
    %v190 = vcvt.s32.f32 %v158
    %v191 = vcvt.s32.f32 %v159
    %v192 = vadd.f32 %v160, 0.0
    %v193 = vadd.f32 %v161, 0.0
    %v194 = vadd.f32 %v162, 0.0
    %v195 = vadd.f32 %v163, 0.0
    %v196 = vadd.f32 %v164, 0.0
    %v197 = vadd.f32 %v165, 0.0
    %v198 = vadd.f32 %v166, 0.0
    %v199 = vadd.f32 %v167, 0.0
    %v200 = vadd.f32 %v168, 0.0
    %v201 = vadd.f32 %v169, 0.0
    %v202 = vadd.f32 %v170, 0.0
    %v203 = vadd.f32 %v171, 0.0
    %v204 = vadd.f32 %v172, 0.0
    %v205 = vadd.f32 %v173, 0.0
    %v206 = vadd.f32 %v174, 0.0
    %v207 = vadd.f32 %v175, 0.0
    %v208 = vadd.f32 %v176, 0.0
    %v209 = vadd.f32 %v177, 0.0
    %v210 = vadd.f32 %v178, 0.0
    %v211 = vadd.f32 %v179, 0.0
    %v212 = vadd.f32 %v180, 0.0
    %v213 = vadd.f32 %v181, 0.0
    %v214 = vadd.f32 %v182, 0.0
    %v215 = vadd.f32 %v183, 0.0
    %v216 = vadd.f32 %v184, 0.0
    %v217 = vadd.f32 %v185, 0.0
    %v218 = vadd.f32 %v186, 0.0
    %v219 = vadd.f32 %v187, 0.0
    %v220 = vadd.f32 %v188, 0.0
    %v221 = vadd.f32 %v189, 0.0
    %v222 = vadd.f32 %v190, 0.0
    %v223 = vadd.f32 %v191, 0.0
    %224 = vset.pattern.permute.xlu0 1
    %225 = vperm.xlu0 %224, %v29
    %v226 = vpop.permute.xlu0 %225
    %227 = vset.pattern.permute.xlu0 1
    %228 = vperm.xlu0 %227, %v30
    %v229 = vpop.permute.xlu0 %228
    %230 = vset.pattern.permute.xlu0 1
    %231 = vperm.xlu0 %230, %v31
    %v232 = vpop.permute.xlu0 %231
    %233 = vset.pattern.permute.xlu0 1
    %234 = vperm.xlu0 %233, %v32
    %v235 = vpop.permute.xlu0 %234
    %236 = vset.pattern.permute.xlu0 1
    %237 = vperm.xlu0 %236, %v33
    %v238 = vpop.permute.xlu0 %237
    %239 = vset.pattern.permute.xlu0 1
    %240 = vperm.xlu0 %239, %v34
    %v241 = vpop.permute.xlu0 %240
    %242 = vset.pattern.permute.xlu0 1
    %243 = vperm.xlu0 %242, %v35
    %v244 = vpop.permute.xlu0 %243
    %245 = vset.pattern.permute.xlu0 1
    %246 = vperm.xlu0 %245, %v36
    %v247 = vpop.permute.xlu0 %246
    %248 = vset.pattern.permute.xlu0 1
    %249 = vperm.xlu0 %248, %v37
    %v250 = vpop.permute.xlu0 %249
    %251 = vset.pattern.permute.xlu0 1
    %252 = vperm.xlu0 %251, %v38
    %v253 = vpop.permute.xlu0 %252
    %254 = vset.pattern.permute.xlu0 1
    %255 = vperm.xlu0 %254, %v39
    %v256 = vpop.permute.xlu0 %255
    %257 = vset.pattern.permute.xlu0 1
    %258 = vperm.xlu0 %257, %v40
    %v259 = vpop.permute.xlu0 %258
    %260 = vset.pattern.permute.xlu0 1
    %261 = vperm.xlu0 %260, %v41
    %v262 = vpop.permute.xlu0 %261
    %263 = vset.pattern.permute.xlu0 1
    %264 = vperm.xlu0 %263, %v42
    %v265 = vpop.permute.xlu0 %264
    %266 = vset.pattern.permute.xlu0 1
    %267 = vperm.xlu0 %266, %v43
    %v268 = vpop.permute.xlu0 %267
    %269 = vset.pattern.permute.xlu0 1
    %270 = vperm.xlu0 %269, %v44
    %v271 = vpop.permute.xlu0 %270
    %vm272 = vcmp.eq.s32.totalorder %v226, %v46
    %vm273 = vcmp.eq.s32.totalorder %v226, %v47
    %vm274 = vcmp.eq.s32.totalorder %v229, %v46
    %vm275 = vcmp.eq.s32.totalorder %v229, %v47
    %vm276 = vcmp.eq.s32.totalorder %v232, %v46
    %vm277 = vcmp.eq.s32.totalorder %v232, %v47
    %vm278 = vcmp.eq.s32.totalorder %v235, %v46
    %vm279 = vcmp.eq.s32.totalorder %v235, %v47
    %vm280 = vcmp.eq.s32.totalorder %v238, %v46
    %vm281 = vcmp.eq.s32.totalorder %v238, %v47
    %vm282 = vcmp.eq.s32.totalorder %v241, %v46
    %vm283 = vcmp.eq.s32.totalorder %v241, %v47
    %vm284 = vcmp.eq.s32.totalorder %v244, %v46
    %vm285 = vcmp.eq.s32.totalorder %v244, %v47
    %vm286 = vcmp.eq.s32.totalorder %v247, %v46
    %vm287 = vcmp.eq.s32.totalorder %v247, %v47
    %vm288 = vcmp.eq.s32.totalorder %v250, %v46
    %vm289 = vcmp.eq.s32.totalorder %v250, %v47
    %vm290 = vcmp.eq.s32.totalorder %v253, %v46
    %vm291 = vcmp.eq.s32.totalorder %v253, %v47
    %vm292 = vcmp.eq.s32.totalorder %v256, %v46
    %vm293 = vcmp.eq.s32.totalorder %v256, %v47
    %vm294 = vcmp.eq.s32.totalorder %v259, %v46
    %vm295 = vcmp.eq.s32.totalorder %v259, %v47
    %vm296 = vcmp.eq.s32.totalorder %v262, %v46
    %vm297 = vcmp.eq.s32.totalorder %v262, %v47
    %vm298 = vcmp.eq.s32.totalorder %v265, %v46
    %vm299 = vcmp.eq.s32.totalorder %v265, %v47
    %vm300 = vcmp.eq.s32.totalorder %v268, %v46
    %vm301 = vcmp.eq.s32.totalorder %v268, %v47
    %vm302 = vcmp.eq.s32.totalorder %v271, %v46
    %vm303 = vcmp.eq.s32.totalorder %v271, %v47
    %v304 = vsel %vm272, 1, 0
    %v305 = vsel %vm273, 1, 0
    %v306 = vsel %vm274, 1, 0
    %v307 = vsel %vm275, 1, 0
    %v308 = vsel %vm276, 1, 0
    %v309 = vsel %vm277, 1, 0
    %v310 = vsel %vm278, 1, 0
    %v311 = vsel %vm279, 1, 0
    %v312 = vsel %vm280, 1, 0
    %v313 = vsel %vm281, 1, 0
    %v314 = vsel %vm282, 1, 0
    %v315 = vsel %vm283, 1, 0
    %v316 = vsel %vm284, 1, 0
    %v317 = vsel %vm285, 1, 0
    %v318 = vsel %vm286, 1, 0
    %v319 = vsel %vm287, 1, 0
    %v320 = vsel %vm288, 1, 0
    %v321 = vsel %vm289, 1, 0
    %v322 = vsel %vm290, 1, 0
    %v323 = vsel %vm291, 1, 0
    %v324 = vsel %vm292, 1, 0
    %v325 = vsel %vm293, 1, 0
    %v326 = vsel %vm294, 1, 0
    %v327 = vsel %vm295, 1, 0
    %v328 = vsel %vm296, 1, 0
    %v329 = vsel %vm297, 1, 0
    %v330 = vsel %vm298, 1, 0
    %v331 = vsel %vm299, 1, 0
    %v332 = vsel %vm300, 1, 0
    %v333 = vsel %vm301, 1, 0
    %v334 = vsel %vm302, 1, 0
    %v335 = vsel %vm303, 1, 0
    %v336 = vcvt.s32.f32 %v304
    %v337 = vcvt.s32.f32 %v305
    %v338 = vcvt.s32.f32 %v306
    %v339 = vcvt.s32.f32 %v307
    %v340 = vcvt.s32.f32 %v308
    %v341 = vcvt.s32.f32 %v309
    %v342 = vcvt.s32.f32 %v310
    %v343 = vcvt.s32.f32 %v311
    %v344 = vcvt.s32.f32 %v312
    %v345 = vcvt.s32.f32 %v313
    %v346 = vcvt.s32.f32 %v314
    %v347 = vcvt.s32.f32 %v315
    %v348 = vcvt.s32.f32 %v316
    %v349 = vcvt.s32.f32 %v317
    %v350 = vcvt.s32.f32 %v318
    %v351 = vcvt.s32.f32 %v319
    %v352 = vcvt.s32.f32 %v320
    %v353 = vcvt.s32.f32 %v321
    %v354 = vcvt.s32.f32 %v322
    %v355 = vcvt.s32.f32 %v323
    %v356 = vcvt.s32.f32 %v324
    %v357 = vcvt.s32.f32 %v325
    %v358 = vcvt.s32.f32 %v326
    %v359 = vcvt.s32.f32 %v327
    %v360 = vcvt.s32.f32 %v328
    %v361 = vcvt.s32.f32 %v329
    %v362 = vcvt.s32.f32 %v330
    %v363 = vcvt.s32.f32 %v331
    %v364 = vcvt.s32.f32 %v332
    %v365 = vcvt.s32.f32 %v333
    %v366 = vcvt.s32.f32 %v334
    %v367 = vcvt.s32.f32 %v335
    %v368 = vadd.f32 %v192, %v336
    %v369 = vadd.f32 %v193, %v337
    %v370 = vadd.f32 %v194, %v338
    %v371 = vadd.f32 %v195, %v339
    %v372 = vadd.f32 %v196, %v340
    %v373 = vadd.f32 %v197, %v341
    %v374 = vadd.f32 %v198, %v342
    %v375 = vadd.f32 %v199, %v343
    %v376 = vadd.f32 %v200, %v344
    %v377 = vadd.f32 %v201, %v345
    %v378 = vadd.f32 %v202, %v346
    %v379 = vadd.f32 %v203, %v347
    %v380 = vadd.f32 %v204, %v348
    %v381 = vadd.f32 %v205, %v349
    %v382 = vadd.f32 %v206, %v350
    %v383 = vadd.f32 %v207, %v351
    %v384 = vadd.f32 %v208, %v352
    %v385 = vadd.f32 %v209, %v353
    %v386 = vadd.f32 %v210, %v354
    %v387 = vadd.f32 %v211, %v355
    %v388 = vadd.f32 %v212, %v356
    %v389 = vadd.f32 %v213, %v357
    %v390 = vadd.f32 %v214, %v358
    %v391 = vadd.f32 %v215, %v359
    %v392 = vadd.f32 %v216, %v360
    %v393 = vadd.f32 %v217, %v361
    %v394 = vadd.f32 %v218, %v362
    %v395 = vadd.f32 %v219, %v363
    %v396 = vadd.f32 %v220, %v364
    %v397 = vadd.f32 %v221, %v365
    %v398 = vadd.f32 %v222, %v366
    %v399 = vadd.f32 %v223, %v367
    %400 = vset.pattern.permute.xlu0 2
    %401 = vperm.xlu0 %400, %v29
    %v402 = vpop.permute.xlu0 %401
    %403 = vset.pattern.permute.xlu0 2
    %404 = vperm.xlu0 %403, %v30
    %v405 = vpop.permute.xlu0 %404
    %406 = vset.pattern.permute.xlu0 2
    %407 = vperm.xlu0 %406, %v31
    %v408 = vpop.permute.xlu0 %407
    %409 = vset.pattern.permute.xlu0 2
    %410 = vperm.xlu0 %409, %v32
    %v411 = vpop.permute.xlu0 %410
    %412 = vset.pattern.permute.xlu0 2
    %413 = vperm.xlu0 %412, %v33
    %v414 = vpop.permute.xlu0 %413
    %415 = vset.pattern.permute.xlu0 2
    %416 = vperm.xlu0 %415, %v34
    %v417 = vpop.permute.xlu0 %416
    %418 = vset.pattern.permute.xlu0 2
    %419 = vperm.xlu0 %418, %v35
    %v420 = vpop.permute.xlu0 %419
    %421 = vset.pattern.permute.xlu0 2
    %422 = vperm.xlu0 %421, %v36
    %v423 = vpop.permute.xlu0 %422
    %424 = vset.pattern.permute.xlu0 2
    %425 = vperm.xlu0 %424, %v37
    %v426 = vpop.permute.xlu0 %425
    %427 = vset.pattern.permute.xlu0 2
    %428 = vperm.xlu0 %427, %v38
    %v429 = vpop.permute.xlu0 %428
    %430 = vset.pattern.permute.xlu0 2
    %431 = vperm.xlu0 %430, %v39
    %v432 = vpop.permute.xlu0 %431
    %433 = vset.pattern.permute.xlu0 2
    %434 = vperm.xlu0 %433, %v40
    %v435 = vpop.permute.xlu0 %434
    %436 = vset.pattern.permute.xlu0 2
    %437 = vperm.xlu0 %436, %v41
    %v438 = vpop.permute.xlu0 %437
    %439 = vset.pattern.permute.xlu0 2
    %440 = vperm.xlu0 %439, %v42
    %v441 = vpop.permute.xlu0 %440
    %442 = vset.pattern.permute.xlu0 2
    %443 = vperm.xlu0 %442, %v43
    %v444 = vpop.permute.xlu0 %443
    %445 = vset.pattern.permute.xlu0 2
    %446 = vperm.xlu0 %445, %v44
    %v447 = vpop.permute.xlu0 %446
    %vm448 = vcmp.eq.s32.totalorder %v402, %v46
    %vm449 = vcmp.eq.s32.totalorder %v402, %v47
    %vm450 = vcmp.eq.s32.totalorder %v405, %v46
    %vm451 = vcmp.eq.s32.totalorder %v405, %v47
    %vm452 = vcmp.eq.s32.totalorder %v408, %v46
    %vm453 = vcmp.eq.s32.totalorder %v408, %v47
    %vm454 = vcmp.eq.s32.totalorder %v411, %v46
    %vm455 = vcmp.eq.s32.totalorder %v411, %v47
    %vm456 = vcmp.eq.s32.totalorder %v414, %v46
    %vm457 = vcmp.eq.s32.totalorder %v414, %v47
    %vm458 = vcmp.eq.s32.totalorder %v417, %v46
    %vm459 = vcmp.eq.s32.totalorder %v417, %v47
    %vm460 = vcmp.eq.s32.totalorder %v420, %v46
    %vm461 = vcmp.eq.s32.totalorder %v420, %v47
    %vm462 = vcmp.eq.s32.totalorder %v423, %v46
    %vm463 = vcmp.eq.s32.totalorder %v423, %v47
    %vm464 = vcmp.eq.s32.totalorder %v426, %v46
    %vm465 = vcmp.eq.s32.totalorder %v426, %v47
    %vm466 = vcmp.eq.s32.totalorder %v429, %v46
    %vm467 = vcmp.eq.s32.totalorder %v429, %v47
    %vm468 = vcmp.eq.s32.totalorder %v432, %v46
    %vm469 = vcmp.eq.s32.totalorder %v432, %v47
    %vm470 = vcmp.eq.s32.totalorder %v435, %v46
    %vm471 = vcmp.eq.s32.totalorder %v435, %v47
    %vm472 = vcmp.eq.s32.totalorder %v438, %v46
    %vm473 = vcmp.eq.s32.totalorder %v438, %v47
    %vm474 = vcmp.eq.s32.totalorder %v441, %v46
    %vm475 = vcmp.eq.s32.totalorder %v441, %v47
    %vm476 = vcmp.eq.s32.totalorder %v444, %v46
    %vm477 = vcmp.eq.s32.totalorder %v444, %v47
    %vm478 = vcmp.eq.s32.totalorder %v447, %v46
    %vm479 = vcmp.eq.s32.totalorder %v447, %v47
    %v480 = vsel %vm448, 1, 0
    %v481 = vsel %vm449, 1, 0
    %v482 = vsel %vm450, 1, 0
    %v483 = vsel %vm451, 1, 0
    %v484 = vsel %vm452, 1, 0
    %v485 = vsel %vm453, 1, 0
    %v486 = vsel %vm454, 1, 0
    %v487 = vsel %vm455, 1, 0
    %v488 = vsel %vm456, 1, 0
    %v489 = vsel %vm457, 1, 0
    %v490 = vsel %vm458, 1, 0
    %v491 = vsel %vm459, 1, 0
    %v492 = vsel %vm460, 1, 0
    %v493 = vsel %vm461, 1, 0
    %v494 = vsel %vm462, 1, 0
    %v495 = vsel %vm463, 1, 0
    %v496 = vsel %vm464, 1, 0
    %v497 = vsel %vm465, 1, 0
    %v498 = vsel %vm466, 1, 0
    %v499 = vsel %vm467, 1, 0
    %v500 = vsel %vm468, 1, 0
    %v501 = vsel %vm469, 1, 0
    %v502 = vsel %vm470, 1, 0
    %v503 = vsel %vm471, 1, 0
    %v504 = vsel %vm472, 1, 0
    %v505 = vsel %vm473, 1, 0
    %v506 = vsel %vm474, 1, 0
    %v507 = vsel %vm475, 1, 0
    %v508 = vsel %vm476, 1, 0
    %v509 = vsel %vm477, 1, 0
    %v510 = vsel %vm478, 1, 0
    %v511 = vsel %vm479, 1, 0
    %v512 = vcvt.s32.f32 %v480
    %v513 = vcvt.s32.f32 %v481
    %v514 = vcvt.s32.f32 %v482
    %v515 = vcvt.s32.f32 %v483
    %v516 = vcvt.s32.f32 %v484
    %v517 = vcvt.s32.f32 %v485
    %v518 = vcvt.s32.f32 %v486
    %v519 = vcvt.s32.f32 %v487
    %v520 = vcvt.s32.f32 %v488
    %v521 = vcvt.s32.f32 %v489
    %v522 = vcvt.s32.f32 %v490
    %v523 = vcvt.s32.f32 %v491
    %v524 = vcvt.s32.f32 %v492
    %v525 = vcvt.s32.f32 %v493
    %v526 = vcvt.s32.f32 %v494
    %v527 = vcvt.s32.f32 %v495
    %v528 = vcvt.s32.f32 %v496
    %v529 = vcvt.s32.f32 %v497
    %v530 = vcvt.s32.f32 %v498
    %v531 = vcvt.s32.f32 %v499
    %v532 = vcvt.s32.f32 %v500
    %v533 = vcvt.s32.f32 %v501
    %v534 = vcvt.s32.f32 %v502
    %v535 = vcvt.s32.f32 %v503
    %v536 = vcvt.s32.f32 %v504
    %v537 = vcvt.s32.f32 %v505
    %v538 = vcvt.s32.f32 %v506
    %v539 = vcvt.s32.f32 %v507
    %v540 = vcvt.s32.f32 %v508
    %v541 = vcvt.s32.f32 %v509
    %v542 = vcvt.s32.f32 %v510
    %v543 = vcvt.s32.f32 %v511
    %v544 = vadd.f32 %v368, %v512
    %v545 = vadd.f32 %v369, %v513
    %v546 = vadd.f32 %v370, %v514
    %v547 = vadd.f32 %v371, %v515
    %v548 = vadd.f32 %v372, %v516
    %v549 = vadd.f32 %v373, %v517
    %v550 = vadd.f32 %v374, %v518
    %v551 = vadd.f32 %v375, %v519
    %v552 = vadd.f32 %v376, %v520
    %v553 = vadd.f32 %v377, %v521
    %v554 = vadd.f32 %v378, %v522
    %v555 = vadd.f32 %v379, %v523
    %v556 = vadd.f32 %v380, %v524
    %v557 = vadd.f32 %v381, %v525
    %v558 = vadd.f32 %v382, %v526
    %v559 = vadd.f32 %v383, %v527
    %v560 = vadd.f32 %v384, %v528
    %v561 = vadd.f32 %v385, %v529
    %v562 = vadd.f32 %v386, %v530
    %v563 = vadd.f32 %v387, %v531
    %v564 = vadd.f32 %v388, %v532
    %v565 = vadd.f32 %v389, %v533
    %v566 = vadd.f32 %v390, %v534
    %v567 = vadd.f32 %v391, %v535
    %v568 = vadd.f32 %v392, %v536
    %v569 = vadd.f32 %v393, %v537
    %v570 = vadd.f32 %v394, %v538
    %v571 = vadd.f32 %v395, %v539
    %v572 = vadd.f32 %v396, %v540
    %v573 = vadd.f32 %v397, %v541
    %v574 = vadd.f32 %v398, %v542
    %v575 = vadd.f32 %v399, %v543
    %576 = vset.pattern.permute.xlu0 3
    %577 = vperm.xlu0 %576, %v29
    %v578 = vpop.permute.xlu0 %577
    %579 = vset.pattern.permute.xlu0 3
    %580 = vperm.xlu0 %579, %v30
    %v581 = vpop.permute.xlu0 %580
    %582 = vset.pattern.permute.xlu0 3
    %583 = vperm.xlu0 %582, %v31
    %v584 = vpop.permute.xlu0 %583
    %585 = vset.pattern.permute.xlu0 3
    %586 = vperm.xlu0 %585, %v32
    %v587 = vpop.permute.xlu0 %586
    %588 = vset.pattern.permute.xlu0 3
    %589 = vperm.xlu0 %588, %v33
    %v590 = vpop.permute.xlu0 %589
    %591 = vset.pattern.permute.xlu0 3
    %592 = vperm.xlu0 %591, %v34
    %v593 = vpop.permute.xlu0 %592
    %594 = vset.pattern.permute.xlu0 3
    %595 = vperm.xlu0 %594, %v35
    %v596 = vpop.permute.xlu0 %595
    %597 = vset.pattern.permute.xlu0 3
    %598 = vperm.xlu0 %597, %v36
    %v599 = vpop.permute.xlu0 %598
    %600 = vset.pattern.permute.xlu0 3
    %601 = vperm.xlu0 %600, %v37
    %v602 = vpop.permute.xlu0 %601
    %603 = vset.pattern.permute.xlu0 3
    %604 = vperm.xlu0 %603, %v38
    %v605 = vpop.permute.xlu0 %604
    %606 = vset.pattern.permute.xlu0 3
    %607 = vperm.xlu0 %606, %v39
    %v608 = vpop.permute.xlu0 %607
    %609 = vset.pattern.permute.xlu0 3
    %610 = vperm.xlu0 %609, %v40
    %v611 = vpop.permute.xlu0 %610
    %612 = vset.pattern.permute.xlu0 3
    %613 = vperm.xlu0 %612, %v41
    %v614 = vpop.permute.xlu0 %613
    %615 = vset.pattern.permute.xlu0 3
    %616 = vperm.xlu0 %615, %v42
    %v617 = vpop.permute.xlu0 %616
    %618 = vset.pattern.permute.xlu0 3
    %619 = vperm.xlu0 %618, %v43
    %v620 = vpop.permute.xlu0 %619
    %621 = vset.pattern.permute.xlu0 3
    %622 = vperm.xlu0 %621, %v44
    %v623 = vpop.permute.xlu0 %622
    %vm624 = vcmp.eq.s32.totalorder %v578, %v46
    %vm625 = vcmp.eq.s32.totalorder %v578, %v47
    %vm626 = vcmp.eq.s32.totalorder %v581, %v46
    %vm627 = vcmp.eq.s32.totalorder %v581, %v47
    %vm628 = vcmp.eq.s32.totalorder %v584, %v46
    %vm629 = vcmp.eq.s32.totalorder %v584, %v47
    %vm630 = vcmp.eq.s32.totalorder %v587, %v46
    %vm631 = vcmp.eq.s32.totalorder %v587, %v47
    %vm632 = vcmp.eq.s32.totalorder %v590, %v46
    %vm633 = vcmp.eq.s32.totalorder %v590, %v47
    %vm634 = vcmp.eq.s32.totalorder %v593, %v46
    %vm635 = vcmp.eq.s32.totalorder %v593, %v47
    %vm636 = vcmp.eq.s32.totalorder %v596, %v46
    %vm637 = vcmp.eq.s32.totalorder %v596, %v47
    %vm638 = vcmp.eq.s32.totalorder %v599, %v46
    %vm639 = vcmp.eq.s32.totalorder %v599, %v47
    %vm640 = vcmp.eq.s32.totalorder %v602, %v46
    %vm641 = vcmp.eq.s32.totalorder %v602, %v47
    %vm642 = vcmp.eq.s32.totalorder %v605, %v46
    %vm643 = vcmp.eq.s32.totalorder %v605, %v47
    %vm644 = vcmp.eq.s32.totalorder %v608, %v46
    %vm645 = vcmp.eq.s32.totalorder %v608, %v47
    %vm646 = vcmp.eq.s32.totalorder %v611, %v46
    %vm647 = vcmp.eq.s32.totalorder %v611, %v47
    %vm648 = vcmp.eq.s32.totalorder %v614, %v46
    %vm649 = vcmp.eq.s32.totalorder %v614, %v47
    %vm650 = vcmp.eq.s32.totalorder %v617, %v46
    %vm651 = vcmp.eq.s32.totalorder %v617, %v47
    %vm652 = vcmp.eq.s32.totalorder %v620, %v46
    %vm653 = vcmp.eq.s32.totalorder %v620, %v47
    %vm654 = vcmp.eq.s32.totalorder %v623, %v46
    %vm655 = vcmp.eq.s32.totalorder %v623, %v47
    %v656 = vsel %vm624, 1, 0
    %v657 = vsel %vm625, 1, 0
    %v658 = vsel %vm626, 1, 0
    %v659 = vsel %vm627, 1, 0
    %v660 = vsel %vm628, 1, 0
    %v661 = vsel %vm629, 1, 0
    %v662 = vsel %vm630, 1, 0
    %v663 = vsel %vm631, 1, 0
    %v664 = vsel %vm632, 1, 0
    %v665 = vsel %vm633, 1, 0
    %v666 = vsel %vm634, 1, 0
    %v667 = vsel %vm635, 1, 0
    %v668 = vsel %vm636, 1, 0
    %v669 = vsel %vm637, 1, 0
    %v670 = vsel %vm638, 1, 0
    %v671 = vsel %vm639, 1, 0
    %v672 = vsel %vm640, 1, 0
    %v673 = vsel %vm641, 1, 0
    %v674 = vsel %vm642, 1, 0
    %v675 = vsel %vm643, 1, 0
    %v676 = vsel %vm644, 1, 0
    %v677 = vsel %vm645, 1, 0
    %v678 = vsel %vm646, 1, 0
    %v679 = vsel %vm647, 1, 0
    %v680 = vsel %vm648, 1, 0
    %v681 = vsel %vm649, 1, 0
    %v682 = vsel %vm650, 1, 0
    %v683 = vsel %vm651, 1, 0
    %v684 = vsel %vm652, 1, 0
    %v685 = vsel %vm653, 1, 0
    %v686 = vsel %vm654, 1, 0
    %v687 = vsel %vm655, 1, 0
    %v688 = vcvt.s32.f32 %v656
    %v689 = vcvt.s32.f32 %v657
    %v690 = vcvt.s32.f32 %v658
    %v691 = vcvt.s32.f32 %v659
    %v692 = vcvt.s32.f32 %v660
    %v693 = vcvt.s32.f32 %v661
    %v694 = vcvt.s32.f32 %v662
    %v695 = vcvt.s32.f32 %v663
    %v696 = vcvt.s32.f32 %v664
    %v697 = vcvt.s32.f32 %v665
    %v698 = vcvt.s32.f32 %v666
    %v699 = vcvt.s32.f32 %v667
    %v700 = vcvt.s32.f32 %v668
    %v701 = vcvt.s32.f32 %v669
    %v702 = vcvt.s32.f32 %v670
    %v703 = vcvt.s32.f32 %v671
    %v704 = vcvt.s32.f32 %v672
    %v705 = vcvt.s32.f32 %v673
    %v706 = vcvt.s32.f32 %v674
    %v707 = vcvt.s32.f32 %v675
    %v708 = vcvt.s32.f32 %v676
    %v709 = vcvt.s32.f32 %v677
    %v710 = vcvt.s32.f32 %v678
    %v711 = vcvt.s32.f32 %v679
    %v712 = vcvt.s32.f32 %v680
    %v713 = vcvt.s32.f32 %v681
    %v714 = vcvt.s32.f32 %v682
    %v715 = vcvt.s32.f32 %v683
    %v716 = vcvt.s32.f32 %v684
    %v717 = vcvt.s32.f32 %v685
    %v718 = vcvt.s32.f32 %v686
    %v719 = vcvt.s32.f32 %v687
    %v720 = vadd.f32 %v544, %v688
    %v721 = vadd.f32 %v545, %v689
    %v722 = vadd.f32 %v546, %v690
    %v723 = vadd.f32 %v547, %v691
    %v724 = vadd.f32 %v548, %v692
    %v725 = vadd.f32 %v549, %v693
    %v726 = vadd.f32 %v550, %v694
    %v727 = vadd.f32 %v551, %v695
    %v728 = vadd.f32 %v552, %v696
    %v729 = vadd.f32 %v553, %v697
    %v730 = vadd.f32 %v554, %v698
    %v731 = vadd.f32 %v555, %v699
    %v732 = vadd.f32 %v556, %v700
    %v733 = vadd.f32 %v557, %v701
    %v734 = vadd.f32 %v558, %v702
    %v735 = vadd.f32 %v559, %v703
    %v736 = vadd.f32 %v560, %v704
    %v737 = vadd.f32 %v561, %v705
    %v738 = vadd.f32 %v562, %v706
    %v739 = vadd.f32 %v563, %v707
    %v740 = vadd.f32 %v564, %v708
    %v741 = vadd.f32 %v565, %v709
    %v742 = vadd.f32 %v566, %v710
    %v743 = vadd.f32 %v567, %v711
    %v744 = vadd.f32 %v568, %v712
    %v745 = vadd.f32 %v569, %v713
    %v746 = vadd.f32 %v570, %v714
    %v747 = vadd.f32 %v571, %v715
    %v748 = vadd.f32 %v572, %v716
    %v749 = vadd.f32 %v573, %v717
    %v750 = vadd.f32 %v574, %v718
    %v751 = vadd.f32 %v575, %v719
    %v752 = vld [vmem:[#allocation2] sm:$0xff]
    %v753 = vld [vmem:[#allocation2 + $0x8] sm:$0xff]
    %v754 = vld [vmem:[#allocation2 + $0x10] sm:$0xff]
    %v755 = vld [vmem:[#allocation2 + $0x18] sm:$0xff]
    %v756 = vld [vmem:[#allocation2 + $0x20] sm:$0xff]
    %v757 = vld [vmem:[#allocation2 + $0x28] sm:$0xff]
    %v758 = vld [vmem:[#allocation2 + $0x30] sm:$0xff]
    %v759 = vld [vmem:[#allocation2 + $0x38] sm:$0xff]
    %v760 = vld [vmem:[#allocation2 + $0x40] sm:$0xff]
    %v761 = vld [vmem:[#allocation2 + $0x48] sm:$0xff]
    %v762 = vld [vmem:[#allocation2 + $0x50] sm:$0xff]
    %v763 = vld [vmem:[#allocation2 + $0x58] sm:$0xff]
    %v764 = vld [vmem:[#allocation2 + $0x60] sm:$0xff]
    %v765 = vld [vmem:[#allocation2 + $0x68] sm:$0xff]
    %v766 = vld [vmem:[#allocation2 + $0x70] sm:$0xff]
    %v767 = vld [vmem:[#allocation2 + $0x78] sm:$0xff]
    %v768 = vld [vmem:[#allocation2 + $0x80] sm:$0xff]
    %v769 = vld [vmem:[#allocation2 + $0x88] sm:$0xff]
    %v770 = vld [vmem:[#allocation2 + $0x90] sm:$0xff]
    %v771 = vld [vmem:[#allocation2 + $0x98] sm:$0xff]
    %v772 = vld [vmem:[#allocation2 + $0xa0] sm:$0xff]
    %v773 = vld [vmem:[#allocation2 + $0xa8] sm:$0xff]
    %v774 = vld [vmem:[#allocation2 + $0xb0] sm:$0xff]
    %v775 = vld [vmem:[#allocation2 + $0xb8] sm:$0xff]
    %v776 = vld [vmem:[#allocation2 + $0xc0] sm:$0xff]
    %v777 = vld [vmem:[#allocation2 + $0xc8] sm:$0xff]
    %v778 = vld [vmem:[#allocation2 + $0xd0] sm:$0xff]
    %v779 = vld [vmem:[#allocation2 + $0xd8] sm:$0xff]
    %v780 = vld [vmem:[#allocation2 + $0xe0] sm:$0xff]
    %v781 = vld [vmem:[#allocation2 + $0xe8] sm:$0xff]
    %v782 = vld [vmem:[#allocation2 + $0xf0] sm:$0xff]
    %v783 = vld [vmem:[#allocation2 + $0xf8] sm:$0xff]
    %v784 = vld [vmem:[#allocation2 + $0x100] sm:$0xff]
    %v785 = vld [vmem:[#allocation2 + $0x108] sm:$0xff]
    %v786 = vld [vmem:[#allocation2 + $0x110] sm:$0xff]
    %v787 = vld [vmem:[#allocation2 + $0x118] sm:$0xff]
    %v788 = vld [vmem:[#allocation2 + $0x120] sm:$0xff]
    %v789 = vld [vmem:[#allocation2 + $0x128] sm:$0xff]
    %v790 = vld [vmem:[#allocation2 + $0x130] sm:$0xff]
    %v791 = vld [vmem:[#allocation2 + $0x138] sm:$0xff]
    %v792 = vld [vmem:[#allocation2 + $0x140] sm:$0xff]
    %v793 = vld [vmem:[#allocation2 + $0x148] sm:$0xff]
    %v794 = vld [vmem:[#allocation2 + $0x150] sm:$0xff]
    %v795 = vld [vmem:[#allocation2 + $0x158] sm:$0xff]
    %v796 = vld [vmem:[#allocation2 + $0x160] sm:$0xff]
    %v797 = vld [vmem:[#allocation2 + $0x168] sm:$0xff]
    %v798 = vld [vmem:[#allocation2 + $0x170] sm:$0xff]
    %v799 = vld [vmem:[#allocation2 + $0x178] sm:$0xff]
    %v800 = vld [vmem:[#allocation2 + $0x180] sm:$0xff]
    %v801 = vld [vmem:[#allocation2 + $0x188] sm:$0xff]
    %v802 = vld [vmem:[#allocation2 + $0x190] sm:$0xff]
    %v803 = vld [vmem:[#allocation2 + $0x198] sm:$0xff]
    %v804 = vld [vmem:[#allocation2 + $0x1a0] sm:$0xff]
    %v805 = vld [vmem:[#allocation2 + $0x1a8] sm:$0xff]
    %v806 = vld [vmem:[#allocation2 + $0x1b0] sm:$0xff]
    %v807 = vld [vmem:[#allocation2 + $0x1b8] sm:$0xff]
    %v808 = vld [vmem:[#allocation2 + $0x1c0] sm:$0xff]
    %v809 = vld [vmem:[#allocation2 + $0x1c8] sm:$0xff]
    %v810 = vld [vmem:[#allocation2 + $0x1d0] sm:$0xff]
    %v811 = vld [vmem:[#allocation2 + $0x1d8] sm:$0xff]
    %v812 = vld [vmem:[#allocation2 + $0x1e0] sm:$0xff]
    %v813 = vld [vmem:[#allocation2 + $0x1e8] sm:$0xff]
    %v814 = vld [vmem:[#allocation2 + $0x1f0] sm:$0xff]
    %v815 = vld [vmem:[#allocation2 + $0x1f8] sm:$0xff]
    %v816 = vld [vmem:[%s2] sm:$0x3]
    %v818 = vlaneseq
    %v819 = vshrl.u32 %v818, 7
    %v820 = vsub.s32 0, %v819
    %v821 = vrot.slane %v816, %v820
    %v822 = vlaneseq
    %v823 = vshrl.u32 %v822, 7
    %v824 = vsub.s32 1, %v823
    %v825 = vrot.slane %v816, %v824
    %828 = vmatprep.subr.mxu0 %v753
    %829 = vmatpush1.msra.mxu0 %v752
    %830 = vmatprep.subr.mxu0 %v755
    %831 = vmatpush1.msra.mxu0 %v754
    %832 = vmatprep.subr.mxu0 %v757
    %833 = vmatpush1.msra.mxu0 %v756
    %834 = vmatprep.subr.mxu0 %v759
    %835 = vmatpush1.msra.mxu0 %v758
    %836 = vmatprep.subr.mxu0 %v761
    %837 = vmatpush1.msra.mxu0 %v760
    %838 = vmatprep.subr.mxu0 %v763
    %839 = vmatpush1.msra.mxu0 %v762
    %840 = vmatprep.subr.mxu0 %v765
    %841 = vmatpush1.msra.mxu0 %v764
    %842 = vmatprep.subr.mxu0 %v767
    %843 = vmatpush1.msra.mxu0 %v766
    %844 = vmatprep.subr.mxu0 %v769
    %845 = vmatpush1.msra.mxu0 %v768
    %846 = vmatprep.subr.mxu0 %v771
    %847 = vmatpush1.msra.mxu0 %v770
    %848 = vmatprep.subr.mxu0 %v773
    %849 = vmatpush1.msra.mxu0 %v772
    %850 = vmatprep.subr.mxu0 %v775
    %851 = vmatpush1.msra.mxu0 %v774
    %852 = vmatprep.subr.mxu0 %v777
    %853 = vmatpush1.msra.mxu0 %v776
    %854 = vmatprep.subr.mxu0 %v779
    %855 = vmatpush1.msra.mxu0 %v778
    %856 = vmatprep.subr.mxu0 %v781
    %857 = vmatpush1.msra.mxu0 %v780
    %858 = vmatprep.subr.mxu0 %v783
    %859 = vmatpush1.msra.mxu0 %v782
    %860 = vmatprep.subr.mxu0 %v785
    %861 = vmatpush1.msra.mxu0 %v784
    %862 = vmatprep.subr.mxu0 %v787
    %863 = vmatpush1.msra.mxu0 %v786
    %864 = vmatprep.subr.mxu0 %v789
    %865 = vmatpush1.msra.mxu0 %v788
    %866 = vmatprep.subr.mxu0 %v791
    %867 = vmatpush1.msra.mxu0 %v790
    %868 = vmatprep.subr.mxu0 %v793
    %869 = vmatpush1.msra.mxu0 %v792
    %870 = vmatprep.subr.mxu0 %v795
    %871 = vmatpush1.msra.mxu0 %v794
    %872 = vmatprep.subr.mxu0 %v797
    %873 = vmatpush1.msra.mxu0 %v796
    %874 = vmatprep.subr.mxu0 %v799
    %875 = vmatpush1.msra.mxu0 %v798
    %876 = vmatprep.subr.mxu0 %v801
    %877 = vmatpush1.msra.mxu0 %v800
    %878 = vmatprep.subr.mxu0 %v803
    %879 = vmatpush1.msra.mxu0 %v802
    %880 = vmatprep.subr.mxu0 %v805
    %881 = vmatpush1.msra.mxu0 %v804
    %882 = vmatprep.subr.mxu0 %v807
    %883 = vmatpush1.msra.mxu0 %v806
    %884 = vmatprep.subr.mxu0 %v809
    %885 = vmatpush1.msra.mxu0 %v808
    %886 = vmatprep.subr.mxu0 %v811
    %887 = vmatpush1.msra.mxu0 %v810
    %888 = vmatprep.subr.mxu0 %v813
    %889 = vmatpush1.msra.mxu0 %v812
    %890 = vmatprep.subr.mxu0 %v815
    %891 = vmatpush1.msra.mxu0 %v814
    %892 = vmatprep.mubr.f32.mxu0 %v721
    %893 = vmatmul.mubr.f32.gmra.mrb[0].mxu0 %v720
    %v894 = vpop.f32.mrb[0].mxu0
    %v895 = vadd.f32 %v821, %v894
    %v896 = vpop.f32.mrb[0].mxu0
    %v897 = vadd.f32 %v825, %v896
    %898 = vmatprep.mubr.f32.mxu0 %v723
    %899 = vmatmul.mubr.f32.gmra.mrb[0].mxu0 %v722
    %v900 = vpop.f32.mrb[0].mxu0
    %v901 = vadd.f32 %v821, %v900
    %v902 = vpop.f32.mrb[0].mxu0
    %v903 = vadd.f32 %v825, %v902
    %904 = vmatprep.mubr.f32.mxu0 %v725
    %905 = vmatmul.mubr.f32.gmra.mrb[0].mxu0 %v724
    %v906 = vpop.f32.mrb[0].mxu0
    %v907 = vadd.f32 %v821, %v906
    %v908 = vpop.f32.mrb[0].mxu0
    %v909 = vadd.f32 %v825, %v908
    %910 = vmatprep.mubr.f32.mxu0 %v727
    %911 = vmatmul.mubr.f32.gmra.mrb[0].mxu0 %v726
    %v912 = vpop.f32.mrb[0].mxu0
    %v913 = vadd.f32 %v821, %v912
    %v914 = vpop.f32.mrb[0].mxu0
    %v915 = vadd.f32 %v825, %v914
    %916 = vmatprep.mubr.f32.mxu0 %v729
    %917 = vmatmul.mubr.f32.gmra.mrb[0].mxu0 %v728
    %v918 = vpop.f32.mrb[0].mxu0
    %v919 = vadd.f32 %v821, %v918
    %v920 = vpop.f32.mrb[0].mxu0
    %v921 = vadd.f32 %v825, %v920
    %922 = vmatprep.mubr.f32.mxu0 %v731
    %923 = vmatmul.mubr.f32.gmra.mrb[0].mxu0 %v730
    %v924 = vpop.f32.mrb[0].mxu0
    %v925 = vadd.f32 %v821, %v924
    %v926 = vpop.f32.mrb[0].mxu0
    %v927 = vadd.f32 %v825, %v926
    %928 = vmatprep.mubr.f32.mxu0 %v733
    %929 = vmatmul.mubr.f32.gmra.mrb[0].mxu0 %v732
    %v930 = vpop.f32.mrb[0].mxu0
    %v931 = vadd.f32 %v821, %v930
    %v932 = vpop.f32.mrb[0].mxu0
    %v933 = vadd.f32 %v825, %v932
    %934 = vmatprep.mubr.f32.mxu0 %v735
    %935 = vmatmul.mubr.f32.gmra.mrb[0].mxu0 %v734
    %v936 = vpop.f32.mrb[0].mxu0
    %v937 = vadd.f32 %v821, %v936
    %v938 = vpop.f32.mrb[0].mxu0
    %v939 = vadd.f32 %v825, %v938
    %940 = vmatprep.mubr.f32.mxu0 %v737
    %941 = vmatmul.mubr.f32.gmra.mrb[0].mxu0 %v736
    %v942 = vpop.f32.mrb[0].mxu0
    %v943 = vadd.f32 %v821, %v942
    %v944 = vpop.f32.mrb[0].mxu0
    %v945 = vadd.f32 %v825, %v944
    %946 = vmatprep.mubr.f32.mxu0 %v739
    %947 = vmatmul.mubr.f32.gmra.mrb[0].mxu0 %v738
    %v948 = vpop.f32.mrb[0].mxu0
    %v949 = vadd.f32 %v821, %v948
    %v950 = vpop.f32.mrb[0].mxu0
    %v951 = vadd.f32 %v825, %v950
    %952 = vmatprep.mubr.f32.mxu0 %v741
    %953 = vmatmul.mubr.f32.gmra.mrb[0].mxu0 %v740
    %v954 = vpop.f32.mrb[0].mxu0
    %v955 = vadd.f32 %v821, %v954
    %v956 = vpop.f32.mrb[0].mxu0
    %v957 = vadd.f32 %v825, %v956
    %958 = vmatprep.mubr.f32.mxu0 %v743
    %959 = vmatmul.mubr.f32.gmra.mrb[0].mxu0 %v742
    %v960 = vpop.f32.mrb[0].mxu0
    %v961 = vadd.f32 %v821, %v960
    %v962 = vpop.f32.mrb[0].mxu0
    %v963 = vadd.f32 %v825, %v962
    %964 = vmatprep.mubr.f32.mxu0 %v745
    %965 = vmatmul.mubr.f32.gmra.mrb[0].mxu0 %v744
    %v966 = vpop.f32.mrb[0].mxu0
    %v967 = vadd.f32 %v821, %v966
    %v968 = vpop.f32.mrb[0].mxu0
    %v969 = vadd.f32 %v825, %v968
    %970 = vmatprep.mubr.f32.mxu0 %v747
    %971 = vmatmul.mubr.f32.gmra.mrb[0].mxu0 %v746
    %v972 = vpop.f32.mrb[0].mxu0
    %v973 = vadd.f32 %v821, %v972
    %v974 = vpop.f32.mrb[0].mxu0
    %v975 = vadd.f32 %v825, %v974
    %976 = vmatprep.mubr.f32.mxu0 %v749
    %977 = vmatmul.mubr.f32.gmra.mrb[0].mxu0 %v748
    %v978 = vpop.f32.mrb[0].mxu0
    %v979 = vadd.f32 %v821, %v978
    %v980 = vpop.f32.mrb[0].mxu0
    %v981 = vadd.f32 %v825, %v980
    %982 = vmatprep.mubr.f32.mxu0 %v751
    %983 = vmatmul.mubr.f32.gmra.mrb[0].mxu0 %v750
    %v984 = vpop.f32.mrb[0].mxu0
    %v985 = vadd.f32 %v821, %v984
    %v986 = vpop.f32.mrb[0].mxu0
    %v987 = vadd.f32 %v825, %v986
    %988 = vdwg.mxu0
    %989 = vst [vmem:[#allocation5] sm:$0xff] %v895
    %990 = vst [vmem:[#allocation5 + $0x8] sm:$0xff] %v897
    %991 = vst [vmem:[#allocation5 + $0x10] sm:$0xff] %v901
    %992 = vst [vmem:[#allocation5 + $0x18] sm:$0xff] %v903
    %993 = vst [vmem:[#allocation5 + $0x20] sm:$0xff] %v907
    %994 = vst [vmem:[#allocation5 + $0x28] sm:$0xff] %v909
    %995 = vst [vmem:[#allocation5 + $0x30] sm:$0xff] %v913
    %996 = vst [vmem:[#allocation5 + $0x38] sm:$0xff] %v915
    %997 = vst [vmem:[#allocation5 + $0x40] sm:$0xff] %v919
    %998 = vst [vmem:[#allocation5 + $0x48] sm:$0xff] %v921
    %999 = vst [vmem:[#allocation5 + $0x50] sm:$0xff] %v925
    %1000 = vst [vmem:[#allocation5 + $0x58] sm:$0xff] %v927
    %1001 = vst [vmem:[#allocation5 + $0x60] sm:$0xff] %v931
    %1002 = vst [vmem:[#allocation5 + $0x68] sm:$0xff] %v933
    %1003 = vst [vmem:[#allocation5 + $0x70] sm:$0xff] %v937
    %1004 = vst [vmem:[#allocation5 + $0x78] sm:$0xff] %v939
    %1005 = vst [vmem:[#allocation5 + $0x80] sm:$0xff] %v943
    %1006 = vst [vmem:[#allocation5 + $0x88] sm:$0xff] %v945
    %1007 = vst [vmem:[#allocation5 + $0x90] sm:$0xff] %v949
    %1008 = vst [vmem:[#allocation5 + $0x98] sm:$0xff] %v951
    %1009 = vst [vmem:[#allocation5 + $0xa0] sm:$0xff] %v955
    %1010 = vst [vmem:[#allocation5 + $0xa8] sm:$0xff] %v957
    %1011 = vst [vmem:[#allocation5 + $0xb0] sm:$0xff] %v961
    %1012 = vst [vmem:[#allocation5 + $0xb8] sm:$0xff] %v963
    %1013 = vst [vmem:[#allocation5 + $0xc0] sm:$0xff] %v967
    %1014 = vst [vmem:[#allocation5 + $0xc8] sm:$0xff] %v969
    %1015 = vst [vmem:[#allocation5 + $0xd0] sm:$0xff] %v973
    %1016 = vst [vmem:[#allocation5 + $0xd8] sm:$0xff] %v975
    %1017 = vst [vmem:[#allocation5 + $0xe0] sm:$0xff] %v979
    %1018 = vst [vmem:[#allocation5 + $0xe8] sm:$0xff] %v981
    %1019 = vst [vmem:[#allocation5 + $0xf0] sm:$0xff] %v985
    %1020 = vst [vmem:[#allocation5 + $0xf8] sm:$0xff] %v987
    // Predicated region
    $region18: #{cbow_forward.1} parent=1 // pred_check
      _
    $region19: #{cbow_forward.1} parent=1 // pred_check_branch
      %1022 = sbr.rel (0) target = $region21
    $region20: #{cbow_forward.1} parent=1 // pred_region
      %s1024 = ssub.s32 4096, 4096
      %1025 = vsyncadd [#allocation4], %s1024
      %s1026 = sshll.u32 [#allocation5], 4
      %s1027 = int_to_ptr.vmem [resolvable:$true] %s1026
      %1032 = dma.vmem_to_hbm [thread:$0]  %s1027, 4096, %s3, [#allocation4], 256, 256, 16
    $region21: #{cbow_forward.1} parent=1 // pred_fallthru
      _
    // Predicated region
    $region22: #{cbow_forward.1} parent=1 // pred_check
      _
    $region23: #{cbow_forward.1} parent=1 // pred_check_branch
      %1034 = sbr.rel (0) target = $region25
    $region24: #{cbow_forward.1} parent=1 // pred_region
      %1035 = dma.done [#allocation4], 4096
    $region25: #{cbow_forward.1} parent=1 // pred_fallthru
      _
    %1036 = vsyncpa [#allocation3], 1
    %1037 = vsyncpa [#allocation4], 1

</llo_original>
